<compile_context>
chip_gen: v6e
topology: v6e:2x2x1
jax: 0.10.0
libtpu: 0.0.40
codegen_flags: <defaults>
</compile_context>

<pallas_src>
import functools

import jax
import jax.numpy as jnp
from jax.experimental import pallas as pl
from jax.experimental.pallas import tpu as pltpu


# VMEM budgets: v7x has 64 MiB physical VMEM (v5e/v6e have 128 MiB) but the
# default scoped limits are only 16/32/32 MiB.  48 MiB fits every generation's
# physical VMEM; blocks are budgeted well under it.
_VMEM_LIMIT_BYTES = 48 * 1024 * 1024
_FUSED_STRIP_BUDGET = 36 * 1024 * 1024   # in+out double-buffered strip bytes
_BLOCK_TARGET_BYTES = 2 * 1024 * 1024    # per-block target for streaming passes


def _params(*sem):
    return pltpu.CompilerParams(dimension_semantics=sem,
                                vmem_limit_bytes=_VMEM_LIMIT_BYTES)


def _sublane_granule(dtype):
    # Native sublane packing: 8 rows (32-bit), 16 (16-bit), 32 (8-bit).
    return max(8, 32 // jnp.dtype(dtype).itemsize)


def _pick_tile(total, target, granule):
    """Largest multiple of `granule` <= target that divides `total`, else `total`."""
    if total <= target:
        return total
    t = (target // granule) * granule
    while t >= granule:
        if total % t == 0:
            return t
        t -= granule
    # TODO(synk): non-divisible large dims fall back to the full extent; a cdiv
    # grid with in-kernel masking would bound VMEM for pathological shapes.
    return total


# ---------------------------------------------------------------------------
# Kernels
# ---------------------------------------------------------------------------

def _cvn_fused_kernel(x_ref, o_ref, m_ref, *, inv_count):
    """One pass over a (R, tile_l) strip: column mean, subtract, store both."""
    x = x_ref[...].astype(jnp.float32)
    mean = jnp.sum(x, axis=0, keepdims=True) * inv_count
    m_ref[...] = mean
    o_ref[...] = (x - mean).astype(o_ref.dtype)


def _cvn_sum_kernel(x_ref, o_ref, *, inv_count):
    """Two-pass fallback: accumulate column sums; scale to mean at the end.

    grid = (L_tiles [parallel], R_tiles [arbitrary]); out (1, tile_l) resident.
    """
    j = pl.program_id(1)

    @pl.when(j == 0)
    def _():
        o_ref[...] = jnp.zeros_like(o_ref)

    o_ref[...] += jnp.sum(x_ref[...].astype(jnp.float32), axis=0, keepdims=True)

    @pl.when(j == pl.num_programs(1) - 1)
    def _():
        o_ref[...] *= inv_count


def _cvn_sub_kernel(x_ref, m_ref, o_ref):
    o_ref[...] = (x_ref[...] - m_ref[...]).astype(o_ref.dtype)


def _svn_sum_kernel(x_ref, o_ref):
    """Per-channel partial sums; shard axis 0 is megacore-parallel.

    grid = (shards [parallel], N_blocks [arbitrary], HW_tiles [arbitrary])
    x block: (tile_n, C, tile_hw); out block: (1, C, 1) per shard, resident.
    """
    b = pl.program_id(1)
    t = pl.program_id(2)

    @pl.when((b == 0) & (t == 0))
    def _():
        o_ref[...] = jnp.zeros_like(o_ref)

    x = x_ref[...].astype(jnp.float32)
    o_ref[...] += jnp.sum(jnp.sum(x, axis=2, keepdims=True), axis=0, keepdims=True)


def _svn_sub_kernel(x_ref, m_ref, o_ref):
    o_ref[...] = (x_ref[...] - m_ref[...]).astype(o_ref.dtype)


# ---------------------------------------------------------------------------
# CVN wrappers (x viewed as (R = N*C, L = H*W))
# ---------------------------------------------------------------------------

def _cvn_fused(x2, inv_count):
    """Fused mean+subtract.  Returns (out, mean(1,L)) or None if it won't fit."""
    R, L = x2.shape
    itemsize = jnp.dtype(x2.dtype).itemsize
    # in + out strips, double-buffered, plus the tiny f32 mean block.
    bytes_per_lane = 4 * R * itemsize + 2 * 4
    max_tile_l = _FUSED_STRIP_BUDGET // bytes_per_lane
    if max_tile_l < min(L, 128):
        return None
    tile_l = _pick_tile(L, min(4096, max_tile_l), 128)
    if bytes_per_lane * tile_l > _FUSED_STRIP_BUDGET:
        return None  # non-divisible L fell back to full extent and is too big

    kernel = functools.partial(_cvn_fused_kernel, inv_count=inv_count)
    out, mean = pl.pallas_call(
        kernel,
        out_shape=(jax.ShapeDtypeStruct((R, L), x2.dtype),
                   jax.ShapeDtypeStruct((1, L), jnp.float32)),
        grid=(L // tile_l,),
        in_specs=[pl.BlockSpec((R, tile_l), lambda i: (0, i))],
        out_specs=(pl.BlockSpec((R, tile_l), lambda i: (0, i)),
                   pl.BlockSpec((1, tile_l), lambda i: (0, i))),
        compiler_params=_params("parallel"),
    )(x2)
    return out, mean


def _cvn_tiles(R, L, dtype):
    granule = _sublane_granule(dtype)
    tile_l = _pick_tile(L, 2048, 128)
    # When H*W is small, compensate on the sublane axis so blocks stay ~2 MiB.
    target_r = max(256,
                   _BLOCK_TARGET_BYTES // max(1, tile_l * jnp.dtype(dtype).itemsize))
    tile_r = _pick_tile(R, target_r, granule)
    return tile_r, tile_l


def _cvn_mean_twopass(x2, inv_count):
    R, L = x2.shape
    tile_r, tile_l = _cvn_tiles(R, L, x2.dtype)
    kernel = functools.partial(_cvn_sum_kernel, inv_count=inv_count)
    return pl.pallas_call(
        kernel,
        out_shape=jax.ShapeDtypeStruct((1, L), jnp.float32),
        grid=(L // tile_l, R // tile_r),
        in_specs=[pl.BlockSpec((tile_r, tile_l), lambda i, j: (j, i))],
        out_specs=pl.BlockSpec((1, tile_l), lambda i, j: (0, i)),
        compiler_params=_params("parallel", "arbitrary"),
    )(x2)


def _cvn_subtract(x2, mean2):
    """x2: (R, L), mean2: (1, L) -> x2 - mean2 (single streaming pass)."""
    R, L = x2.shape
    tile_r, tile_l = _cvn_tiles(R, L, x2.dtype)
    return pl.pallas_call(
        _cvn_sub_kernel,
        out_shape=jax.ShapeDtypeStruct((R, L), x2.dtype),
        grid=(L // tile_l, R // tile_r),
        in_specs=[
            pl.BlockSpec((tile_r, tile_l), lambda i, j: (j, i)),
            # mean block depends only on the outer axis -> stays resident
            # across all inner R steps (no per-step re-DMA).
            pl.BlockSpec((1, tile_l), lambda i, j: (0, i)),
        ],
        out_specs=pl.BlockSpec((tile_r, tile_l), lambda i, j: (j, i)),
        compiler_params=_params("parallel", "parallel"),
    )(x2, mean2)


# ---------------------------------------------------------------------------
# SVN wrappers (x viewed as (N, C, HW))
# ---------------------------------------------------------------------------

def _svn_tiles(N, C, HW, dtype):
    itemsize = jnp.dtype(dtype).itemsize
    tile_hw = _pick_tile(HW, 2048, 128)
    # Don't squeeze N: grow the block along N so each grid step moves ~2 MiB.
    target_n = max(1, _BLOCK_TARGET_BYTES // max(1, C * tile_hw * itemsize))
    tile_n = _pick_tile(N, min(N, target_n), 1)
    return tile_n, tile_hw


def _svn_mean(x3):
    """x3: (N, C, HW) -> per-channel mean over (N, HW), shape (C, 1)."""
    N, C, HW = x3.shape
    tile_n, tile_hw = _svn_tiles(N, C, HW, x3.dtype)
    nb = N // tile_n
    hw_tiles = HW // tile_hw
    # Megacore (v7x): split the HW-tile axis across 2 parallel shards when possible.
    n_shards = 2 if (hw_tiles >= 2 and hw_tiles % 2 == 0) else 1
    tps = hw_tiles // n_shards

    partials = pl.pallas_call(
        _svn_sum_kernel,
        out_shape=jax.ShapeDtypeStruct((n_shards, C, 1), jnp.float32),
        grid=(n_shards, nb, tps),
        in_specs=[pl.BlockSpec((tile_n, C, tile_hw),
                               lambda s, b, t: (b, 0, s * tps + t))],
        out_specs=pl.BlockSpec((1, C, 1), lambda s, b, t: (s, 0, 0)),
        compiler_params=_params("parallel", "arbitrary", "arbitrary"),
    )(x3)
    # Combine per-shard partial sums and scale to mean (tiny plain-JAX op).
    return jnp.sum(partials, axis=0) * (1.0 / (N * HW))          # (C, 1)


def _svn_subtract(x3, mean_c1):
    """x3: (N, C, HW), mean_c1: (C, 1) -> x3 - mean (broadcast over N, HW)."""
    N, C, HW = x3.shape
    tile_n, tile_hw = _svn_tiles(N, C, HW, x3.dtype)
    return pl.pallas_call(
        _svn_sub_kernel,
        out_shape=jax.ShapeDtypeStruct((N, C, HW), x3.dtype),
        grid=(N // tile_n, HW // tile_hw),
        in_specs=[
            pl.BlockSpec((tile_n, C, tile_hw), lambda n, t: (n, 0, t)),
            pl.BlockSpec((C, 1), lambda n, t: (0, 0)),
        ],
        out_specs=pl.BlockSpec((tile_n, C, tile_hw), lambda n, t: (n, 0, t)),
        compiler_params=_params("parallel", "parallel"),
    )(x3, mean_c1)


# ---------------------------------------------------------------------------
# Forward (matches VolumeNorm.forward semantics; running_mean returned, not mutated)
# ---------------------------------------------------------------------------

def volume_norm_forward(x, running_mean, *, dims=(0, 1), training=True,
                        momentum=0.1):
    """Returns (out, new_running_mean)."""
    N, C, H, W = x.shape
    dims = tuple(sorted(dims))

    if dims == (0, 1):          # CVN: mean over (batch, channel), kept per (h, w)
        x2 = x.reshape(N * C, H * W)                              # free reshape
        if training:
            fused = _cvn_fused(x2, 1.0 / (N * C))
            if fused is not None:                                 # x read once
                out2, mean2 = fused
            else:                                                 # large-R fallback
                mean2 = _cvn_mean_twopass(x2, 1.0 / (N * C))
                out2 = _cvn_subtract(x2, mean2)
            sample_mean = mean2.reshape(1, 1, H, W)
            new_rm = (1.0 - momentum) * running_mean + momentum * sample_mean
        else:
            mean2 = jnp.broadcast_to(running_mean, (1, 1, H, W)
                                     ).reshape(1, H * W).astype(jnp.float32)
            out2 = _cvn_subtract(x2, mean2)
            new_rm = running_mean
        return out2.reshape(N, C, H, W), new_rm

    if dims == (0, 2, 3):       # SVN: mean over (batch, h, w), kept per channel
        x3 = x.reshape(N, C, H * W)                               # free reshape
        if training:
            mean_c1 = _svn_mean(x3)                               # (C, 1)
            sample_mean = mean_c1.reshape(1, C, 1, 1)
            new_rm = (1.0 - momentum) * running_mean + momentum * sample_mean
        else:
            mean_c1 = jnp.broadcast_to(running_mean, (1, C, 1, 1)
                                       ).reshape(C, 1).astype(jnp.float32)
            new_rm = running_mean
        out3 = _svn_subtract(x3, mean_c1)
        return out3.reshape(N, C, H, W), new_rm

    # TODO(synk): other dim combinations are not used by the reference module.
    raise NotImplementedError(f"unsupported dims: {dims}")


# ---------------------------------------------------------------------------
# Pure-JAX reference (mirrors the PyTorch forward)
# ---------------------------------------------------------------------------

def _reference_forward(x, running_mean, dims, training, momentum=0.1):
    if training:
        sample_mean = jnp.mean(x, axis=dims, keepdims=True)
        new_rm = (1.0 - momentum) * running_mean + momentum * sample_mean
        return x - sample_mean, new_rm
    return x - running_mean, running_mean


if __name__ == "__main__":
    key = jax.random.PRNGKey(0)
    N, C, H, W = 2, 4, 16, 16
    x = jax.random.normal(key, (N, C, H, W), dtype=jnp.float32)
    rm0 = jnp.zeros((1, 1, 1, 1), dtype=jnp.float32)

    # --- CVN (default dims=(0,1)), training mode (fused single pass) ---
    out, new_rm = volume_norm_forward(x, rm0, dims=(0, 1), training=True)
    out = jax.block_until_ready(out)
    new_rm = jax.block_until_ready(new_rm)
    ref_out, ref_rm = _reference_forward(x, rm0, (0, 1), True)
    assert out.shape == (N, C, H, W)
    assert jnp.allclose(out, ref_out, atol=1e-5, rtol=1e-5), "CVN train mismatch"
    assert jnp.allclose(new_rm, ref_rm, atol=1e-5, rtol=1e-5), "CVN EMA mismatch"

    # --- CVN eval mode (uses updated running_mean buffer) ---
    out_e, _ = volume_norm_forward(x, new_rm, dims=(0, 1), training=False)
    out_e = jax.block_until_ready(out_e)
    ref_e, _ = _reference_forward(x, new_rm, (0, 1), False)
    assert jnp.allclose(out_e, ref_e, atol=1e-5, rtol=1e-5), "CVN eval mismatch"

    # --- SVN (dims=(0,2,3)), training mode ---
    out_s, rm_s = volume_norm_forward(x, rm0, dims=(0, 2, 3), training=True)
    out_s = jax.block_until_ready(out_s)
    rm_s = jax.block_until_ready(rm_s)
    ref_s, ref_rms = _reference_forward(x, rm0, (0, 2, 3), True)
    assert jnp.allclose(out_s, ref_s, atol=1e-5, rtol=1e-5), "SVN train mismatch"
    assert jnp.allclose(rm_s, ref_rms, atol=1e-5, rtol=1e-5), "SVN EMA mismatch"

    print("KERNEL_OK")
</pallas_src>

<mosaic_0001>
module attributes {stable_mosaic.version = 11 : i64} {
  func.func @_cvn_fused_kernel(%arg0: i32, %arg1: memref<8x256xf32, #tpu.memory_space<vmem>>, %arg2: memref<8x256xf32, #tpu.memory_space<vmem>>, %arg3: memref<1x256xf32, #tpu.memory_space<vmem>>) attributes {dimension_semantics = [#tpu.dimension_semantics<parallel>], iteration_bounds = array<i64: 1>, scalar_prefetch = 0 : i64, scratch_operands = 0 : i64, tpu.core_type = #tpu.core_type<tc>, window_params = [{transform_indices = @transform_0, window_bounds = array<i64: 8, 256>}, {transform_indices = @transform_1, window_bounds = array<i64: 8, 256>}, {transform_indices = @transform_2, window_bounds = array<i64: 1, 256>}]} {
    %c0 = arith.constant 0 : index
    %c0_0 = arith.constant 0 : index
    %0 = vector.load %arg1[%c0, %c0_0] : memref<8x256xf32, #tpu.memory_space<vmem>>, vector<8x256xf32>
    %cst = arith.constant dense<0.000000e+00> : vector<256xf32>
    %1 = vector.multi_reduction <add>, %0, %cst [0] : vector<8x256xf32> to vector<256xf32>
    %2 = vector.shape_cast %1 : vector<256xf32> to vector<1x256xf32>
    %cst_1 = arith.constant 1.250000e-01 : f32
    %3 = vector.broadcast %cst_1 : f32 to vector<1x256xf32>
    %4 = arith.mulf %2, %3 : vector<1x256xf32>
    %c0_2 = arith.constant 0 : index
    %c0_3 = arith.constant 0 : index
    %5 = vector.load %arg3[%c0_2, %c0_3] : memref<1x256xf32, #tpu.memory_space<vmem>>, vector<1x256xf32>
    tpu.vector_store %arg3[%c0_2, %c0_3], %4 {strides = array<i32>} : memref<1x256xf32, #tpu.memory_space<vmem>>, vector<1x256xf32>,
    %6 = vector.broadcast %4 : vector<1x256xf32> to vector<8x256xf32>
    %7 = arith.subf %0, %6 : vector<8x256xf32>
    %c0_4 = arith.constant 0 : index
    %c0_5 = arith.constant 0 : index
    %8 = vector.load %arg2[%c0_4, %c0_5] : memref<8x256xf32, #tpu.memory_space<vmem>>, vector<8x256xf32>
    tpu.vector_store %arg2[%c0_4, %c0_5], %7 {strides = array<i32>} : memref<8x256xf32, #tpu.memory_space<vmem>>, vector<8x256xf32>,
    return
  }
  func.func @transform_0(%arg0: i32) -> (i32, i32) {
    %c0_i32 = arith.constant 0 : i32
    %c0_i32_0 = arith.constant 0 : i32
    return %c0_i32, %arg0 : i32, i32
  }
  func.func @transform_1(%arg0: i32) -> (i32, i32) {
    %c0_i32 = arith.constant 0 : i32
    %c0_i32_0 = arith.constant 0 : i32
    return %c0_i32, %arg0 : i32, i32
  }
  func.func @transform_2(%arg0: i32) -> (i32, i32) {
    %c0_i32 = arith.constant 0 : i32
    %c0_i32_0 = arith.constant 0 : i32
    return %c0_i32, %arg0 : i32, i32
  }
}

</mosaic_0001>

<llo_original>
// kernel: tpu_custom_call.1
$region0: #{tpu_custom_call.1}
  #allocation0 [shape = 'u32[]', space=smem, size = 0x4, offset = 0x4, fixed_abs, tag = 'smem constant byte address 0x4 - core index']
  #allocation1 [shape = 'u32[144,128]{1,0:T(1,128)}', space=vmem, size = 0x12000, scoped, tag = 'internal scratch']
  %s0 = inlined_call_operand.hbm [shape: f32[8,256], index: 0, kind: input, shape index: {}]
  %s1 = inlined_call_operand.hbm [shape: f32[8,256], index: 1, kind: output, shape index: {0}]
  %s2 = inlined_call_operand.hbm [shape: f32[1,256], index: 2, kind: output, shape index: {1}]
  %3 = xla_tuple %s1, %s2
  %s4 = sld [smem:[#allocation0]]
  $region26: #{tpu_custom_call.1} parent=0
    _
  %s6 = ssub.s32 1, %s4
  %s7 = scalar_select 0, %s6, %s4
  $region1: #{tpu_custom_call.1} parent=0
    #allocation2 [shape = 'u8[8192]{0}', space=vmem, size = 0x2000, scoped, tag = 'input window, operand 0, single buffered']
    #allocation3 [shape = 's32[1]{0}', space=sflag, size = 0x4, scoped, tag = 'scoped memory for tpu_custom_call.1']
    #allocation4 [shape = 's32[1]{0}', space=sflag, size = 0x4, scoped, tag = 'scoped memory for tpu_custom_call.1']
    #allocation5 [shape = 'u8[8192]{0}', space=vmem, size = 0x2000, scoped, tag = 'output window, operand 0, single buffered']
    #allocation6 [shape = 'u8[1024]{0}', space=vmem, size = 0x400, scoped, tag = 'output window, operand 1, single buffered']
    #allocation7 [shape = 's32[1]{0}', space=sflag, size = 0x4, scoped, tag = 'scoped memory for tpu_custom_call.1']
    %8 = vsyncpa [#allocation3], 0
    %9 = vsyncpa [#allocation4], 0
    %10 = vsyncpa [#allocation7], 0
    // Predicated region
    $region2: #{tpu_custom_call.1} parent=1 // pred_check
      _
    $region3: #{tpu_custom_call.1} parent=1 // pred_check_branch
      %12 = sbr.rel (0) target = $region5
    $region4: #{tpu_custom_call.1} parent=1 // pred_region
      %s14 = ssub.s32 256, 256
      %15 = vsyncadd [#allocation3], %s14
      %s17 = sshll.u32 [#allocation2], 4
      %s18 = int_to_ptr.vmem [resolvable:$true] %s17
      %20 = dma.hbm_to_vmem [thread:$0]  %s0, 256, %s18, [#allocation3]
    $region5: #{tpu_custom_call.1} parent=1 // pred_fallthru
      _
    // Predicated region
    $region6: #{tpu_custom_call.1} parent=1 // pred_check
      _
    $region7: #{tpu_custom_call.1} parent=1 // pred_check_branch
      %22 = sbr.rel (0) target = $region9
    $region8: #{tpu_custom_call.1} parent=1 // pred_region
      %23 = dma.done [#allocation3], 256
    $region9: #{tpu_custom_call.1} parent=1 // pred_fallthru
      _
    %v24 = vld [vmem:[#allocation2] sm:$0xff]
    %v25 = vld [vmem:[#allocation2 + $0x8] sm:$0xff]
    %v26 = vrot.slane %v24, 4
    %v27 = vadd.f32 %v24, %v26
    %v28 = vrot.slane %v27, 2
    %v29 = vadd.f32 %v27, %v28
    %v30 = vrot.slane %v29, 1
    %v31 = vadd.f32 %v29, %v30
    %v32 = vrot.slane %v25, 4
    %v33 = vadd.f32 %v25, %v32
    %v34 = vrot.slane %v33, 2
    %v35 = vadd.f32 %v33, %v34
    %v36 = vrot.slane %v35, 1
    %v37 = vadd.f32 %v35, %v36
    %v38 = vmul.f32 %v31, 0.125
    %v39 = vmul.f32 %v37, 0.125
    %v42 = vcombine.low %v38, %v39
    %v44 = vunpack.c.l.s4 1966171168
    %v45 = vunpack.c.0.s8 %v44
    %v46 = vlaneseq
    %v47 = vshrl.u32 %v46, 7
    %v48 = vsub.s32 %v45, %v47
    %v49 = vrot.slane %v42, %v48
    %v51 = vunpack.c.l.s4 1966171168
    %v52 = vunpack.c.0.s8 %v51
    %v53 = vlaneseq
    %v54 = vshrl.u32 %v53, 7
    %v55 = vsub.s32 %v52, %v54
    %v56 = vrot.slane %v49, %v55
    %v58 = vlaneseq
    %vm59 = vcmp.ge.s32.totalorder %v58, 0
    %vm60 = vcmp.lt.s32.totalorder %v58, 256
    %vm61 = vmand %vm59, %vm60
    %62 = vst.msk [vmem:[#allocation6] sm:$0x3] %vm61, %v56
    %v63 = vsub.f32 %v24, %v38
    %v64 = vsub.f32 %v25, %v39
    %65 = vst [vmem:[#allocation5] sm:$0xff] %v63
    %66 = vst [vmem:[#allocation5 + $0x8] sm:$0xff] %v64
    // Predicated region
    $region10: #{tpu_custom_call.1} parent=1 // pred_check
      _
    $region11: #{tpu_custom_call.1} parent=1 // pred_check_branch
      %68 = sbr.rel (0) target = $region13
    $region12: #{tpu_custom_call.1} parent=1 // pred_region
      %s70 = ssub.s32 256, 256
      %71 = vsyncadd [#allocation4], %s70
      %s73 = sshll.u32 [#allocation5], 4
      %s74 = int_to_ptr.vmem [resolvable:$true] %s73
      %76 = dma.vmem_to_hbm [thread:$0]  %s74, 256, %s1, [#allocation4]
    $region13: #{tpu_custom_call.1} parent=1 // pred_fallthru
      _
    // Predicated region
    $region14: #{tpu_custom_call.1} parent=1 // pred_check
      _
    $region15: #{tpu_custom_call.1} parent=1 // pred_check_branch
      %78 = sbr.rel (0) target = $region17
    $region16: #{tpu_custom_call.1} parent=1 // pred_region
      %s80 = ssub.s32 32, 32
      %81 = vsyncadd [#allocation7], %s80
      %s83 = sshll.u32 [#allocation6], 4
      %s84 = int_to_ptr.vmem [resolvable:$true] %s83
      %86 = dma.vmem_to_hbm [thread:$0]  %s84, 32, %s2, [#allocation7]
    $region17: #{tpu_custom_call.1} parent=1 // pred_fallthru
      _
    // Predicated region
    $region18: #{tpu_custom_call.1} parent=1 // pred_check
      _
    $region19: #{tpu_custom_call.1} parent=1 // pred_check_branch
      %88 = sbr.rel (0) target = $region21
    $region20: #{tpu_custom_call.1} parent=1 // pred_region
      %89 = dma.done [#allocation4], 256
    $region21: #{tpu_custom_call.1} parent=1 // pred_fallthru
      _
    // Predicated region
    $region22: #{tpu_custom_call.1} parent=1 // pred_check
      _
    $region23: #{tpu_custom_call.1} parent=1 // pred_check_branch
      %91 = sbr.rel (0) target = $region25
    $region24: #{tpu_custom_call.1} parent=1 // pred_region
      %92 = dma.done [#allocation7], 32
    $region25: #{tpu_custom_call.1} parent=1 // pred_fallthru
      _
    %93 = vsyncpa [#allocation3], 1
    %94 = vsyncpa [#allocation4], 1
    %95 = vsyncpa [#allocation7], 1

</llo_original>
